<compile_context>
chip_gen: v5e
topology: v5e:2x2
jax: 0.10.0
libtpu: 0.0.40
codegen_flags: <defaults>
</compile_context>

<pallas_src>
import math
from functools import partial

import jax
import jax.numpy as jnp
from jax.experimental import pallas as pl
from jax.experimental.pallas import tpu as pltpu


def _mapping_ff_kernel(x_ref, scale_ref, wxt_ref, wgt_ref, wdt_ref, o_ref, *, eps):
    # x_ref    : (tm, dim)        input row tile (also the residual skip)
    # scale_ref: (1, dim)         RMSNorm scale (resident)
    # wxt_ref  : (dim, inner)     up-proj "value" half, pre-transposed (resident)
    # wgt_ref  : (dim, inner)     up-proj "gate"  half, pre-transposed (resident)
    # wdt_ref  : (inner, dim)     down-proj, pre-transposed (resident)
    # o_ref    : (tm, dim)        output tile
    x = x_ref[...].astype(jnp.float32)

    # --- RMSNorm (f32) ---
    mean_sq = jnp.mean(x * x, axis=-1, keepdims=True)
    inv = jax.lax.rsqrt(mean_sq + eps)
    xn = x * (scale_ref[...].astype(jnp.float32) * inv)

    # --- up projection (GEGLU): value and gate halves as two full-width matmuls ---
    h = jnp.dot(xn, wxt_ref[...], preferred_element_type=jnp.float32)
    g = jnp.dot(xn, wgt_ref[...], preferred_element_type=jnp.float32)
    # exact (erf-based) GELU, matching torch.nn.functional.gelu default
    gelu_g = 0.5 * g * (1.0 + jax.lax.erf(g * (1.0 / math.sqrt(2.0))))
    y = h * gelu_g

    # --- down projection + residual, single full-tile store ---
    out = jnp.dot(y, wdt_ref[...], preferred_element_type=jnp.float32) + x
    o_ref[...] = out.astype(o_ref.dtype)


def mapping_ff_block(x, norm_scale, up_weight, down_weight, *, eps=1e-6, tile_m=256):
    """Pallas equivalent of MappingFeedForwardBlock.forward (inference).

    x:           (N, dim) float32
    norm_scale:  (dim,)                 RMSNorm scale
    up_weight:   (2*inner, dim)         LinearGEGLU weight (no bias)
    down_weight: (dim, inner)           down_proj weight (no bias)
    returns      (N, dim)
    """
    n, dim = x.shape
    two_inner, dim_w = up_weight.shape
    assert dim == dim_w
    inner = two_inner // 2
    assert down_weight.shape == (dim, inner)

    # Glue (done once, outside the kernel): split the GEGLU weight into its
    # value/gate halves and transpose everything to row-major matmul layout.
    wx_t = jnp.transpose(up_weight[:inner])   # (dim, inner)
    wg_t = jnp.transpose(up_weight[inner:])   # (dim, inner)
    wd_t = jnp.transpose(down_weight)         # (inner, dim)
    scale2d = norm_scale.reshape(1, dim)

    # Large row tiles: amortize the ~0.35 us per-grid-step overhead.
    tile_m = min(tile_m, n)
    assert n % tile_m == 0 and (tile_m % 8 == 0 or tile_m == n), (
        "row count must tile cleanly (pad N upstream for arbitrary sizes)"
    )
    grid = (n // tile_m,)

    kernel = partial(_mapping_ff_kernel, eps=eps)

    return pl.pallas_call(
        kernel,
        out_shape=jax.ShapeDtypeStruct((n, dim), x.dtype),
        grid_spec=pltpu.PrefetchScalarGridSpec(
            num_scalar_prefetch=0,
            grid=grid,
            in_specs=[
                pl.BlockSpec((tile_m, dim), lambda i: (i, 0)),   # x rows (streamed)
                pl.BlockSpec((1, dim), lambda i: (0, 0)),        # norm scale (resident)
                pl.BlockSpec((dim, inner), lambda i: (0, 0)),    # up value half (resident)
                pl.BlockSpec((dim, inner), lambda i: (0, 0)),    # up gate half (resident)
                pl.BlockSpec((inner, dim), lambda i: (0, 0)),    # down proj (resident)
            ],
            out_specs=pl.BlockSpec((tile_m, dim), lambda i: (i, 0)),
        ),
        compiler_params=pltpu.CompilerParams(
            dimension_semantics=("parallel",),
        ),
    )(x, scale2d, wx_t, wg_t, wd_t)


def mapping_ff_ref(x, norm_scale, up_weight, down_weight, eps=1e-6):
    xf = x.astype(jnp.float32)
    mean_sq = jnp.mean(xf * xf, axis=-1, keepdims=True)
    xn = xf * (norm_scale.astype(jnp.float32) * jax.lax.rsqrt(mean_sq + eps))
    h = jnp.dot(xn, up_weight.T, precision=jax.lax.Precision.HIGHEST)
    a, g = jnp.split(h, 2, axis=-1)
    gelu_g = 0.5 * g * (1.0 + jax.lax.erf(g / jnp.sqrt(2.0)))
    y = a * gelu_g
    out = jnp.dot(y, down_weight.T, precision=jax.lax.Precision.HIGHEST)
    return out + xf


if __name__ == "__main__":
    key = jax.random.PRNGKey(0)
    k_x, k_s, k_up, k_dn = jax.random.split(key, 4)

    # Small shapes consistent with the module: dim=64, mult=2
    # -> inner_dim = round_to_multiple_of_64(128) = 128
    N = 16
    DIM = 64
    INNER = 128
    EPS = 1e-6

    x = jax.random.normal(k_x, (N, DIM), dtype=jnp.float32)
    # Module inits: scale=ones, down_proj zero-init; use random params here so
    # the correctness check actually exercises every stage of the forward pass.
    norm_scale = 1.0 + 0.1 * jax.random.normal(k_s, (DIM,), dtype=jnp.float32)
    up_weight = jax.random.normal(k_up, (2 * INNER, DIM), dtype=jnp.float32) / math.sqrt(DIM)
    down_weight = jax.random.normal(k_dn, (DIM, INNER), dtype=jnp.float32) / math.sqrt(INNER)

    out = mapping_ff_block(x, norm_scale, up_weight, down_weight, eps=EPS)
    out = jax.block_until_ready(out)

    ref = mapping_ff_ref(x, norm_scale, up_weight, down_weight, eps=EPS)
    assert out.shape == (N, DIM)
    assert jnp.allclose(out, ref, atol=2e-3, rtol=2e-3), float(jnp.max(jnp.abs(out - ref)))

    print("KERNEL_OK")
</pallas_src>

<mosaic_0001>
module attributes {stable_mosaic.version = 11 : i64} {
  func.func @_mapping_ff_kernel(%arg0: i32, %arg1: memref<16x64xf32, #tpu.memory_space<vmem>>, %arg2: memref<1x64xf32, #tpu.memory_space<vmem>>, %arg3: memref<64x128xf32, #tpu.memory_space<vmem>>, %arg4: memref<64x128xf32, #tpu.memory_space<vmem>>, %arg5: memref<128x64xf32, #tpu.memory_space<vmem>>, %arg6: memref<16x64xf32, #tpu.memory_space<vmem>>) attributes {dimension_semantics = [#tpu.dimension_semantics<parallel>], iteration_bounds = array<i64: 1>, scalar_prefetch = 0 : i64, scratch_operands = 0 : i64, tpu.core_type = #tpu.core_type<tc>, window_params = [{transform_indices = @transform_0, window_bounds = array<i64: 16, 64>}, {pipeline_mode = #tpu.pipeline_mode<synchronous>, transform_indices = @transform_1, window_bounds = array<i64: 1, 64>}, {pipeline_mode = #tpu.pipeline_mode<synchronous>, transform_indices = @transform_2, window_bounds = array<i64: 64, 128>}, {pipeline_mode = #tpu.pipeline_mode<synchronous>, transform_indices = @transform_3, window_bounds = array<i64: 64, 128>}, {pipeline_mode = #tpu.pipeline_mode<synchronous>, transform_indices = @transform_4, window_bounds = array<i64: 128, 64>}, {transform_indices = @transform_5, window_bounds = array<i64: 16, 64>}]} {
    %c0 = arith.constant 0 : index
    %c0_0 = arith.constant 0 : index
    %0 = vector.load %arg1[%c0, %c0_0] : memref<16x64xf32, #tpu.memory_space<vmem>>, vector<16x64xf32>
    %1 = arith.mulf %0, %0 : vector<16x64xf32>
    %cst = arith.constant dense<0.000000e+00> : vector<16xf32>
    %2 = vector.multi_reduction <add>, %1, %cst [1] : vector<16x64xf32> to vector<16xf32>
    %3 = vector.shape_cast %2 : vector<16xf32> to vector<16x1xf32>
    %cst_1 = arith.constant 6.400000e+01 : f32
    %4 = vector.broadcast %cst_1 : f32 to vector<16x1xf32>
    %5 = arith.divf %3, %4 : vector<16x1xf32>
    %cst_2 = arith.constant 9.99999997E-7 : f32
    %6 = vector.broadcast %cst_2 : f32 to vector<16x1xf32>
    %7 = arith.addf %5, %6 : vector<16x1xf32>
    %8 = math.rsqrt %7 : vector<16x1xf32>
    %c0_3 = arith.constant 0 : index
    %c0_4 = arith.constant 0 : index
    %9 = vector.load %arg2[%c0_3, %c0_4] : memref<1x64xf32, #tpu.memory_space<vmem>>, vector<1x64xf32>
    %10 = vector.broadcast %9 : vector<1x64xf32> to vector<16x64xf32>
    %11 = vector.broadcast %8 : vector<16x1xf32> to vector<16x64xf32>
    %12 = arith.mulf %10, %11 : vector<16x64xf32>
    %13 = arith.mulf %0, %12 : vector<16x64xf32>
    %c0_5 = arith.constant 0 : index
    %c0_6 = arith.constant 0 : index
    %14 = vector.load %arg3[%c0_5, %c0_6] : memref<64x128xf32, #tpu.memory_space<vmem>>, vector<64x128xf32>
    %cst_7 = arith.constant dense<0.000000e+00> : vector<16x128xf32>
    %15 = tpu.matmul %13, %14, %cst_7 {dimension_numbers = #tpu.dot_dimension_numbers<[1], [0], [0], [1], [0, 0, 1, 1], [], []>} : vector<16x64xf32>, vector<64x128xf32>, vector<16x128xf32> -> vector<16x128xf32>
    %c0_8 = arith.constant 0 : index
    %c0_9 = arith.constant 0 : index
    %16 = vector.load %arg4[%c0_8, %c0_9] : memref<64x128xf32, #tpu.memory_space<vmem>>, vector<64x128xf32>
    %cst_10 = arith.constant dense<0.000000e+00> : vector<16x128xf32>
    %17 = tpu.matmul %13, %16, %cst_10 {dimension_numbers = #tpu.dot_dimension_numbers<[1], [0], [0], [1], [0, 0, 1, 1], [], []>} : vector<16x64xf32>, vector<64x128xf32>, vector<16x128xf32> -> vector<16x128xf32>
    %cst_11 = arith.constant 5.000000e-01 : f32
    %18 = vector.broadcast %cst_11 : f32 to vector<16x128xf32>
    %19 = arith.mulf %18, %17 : vector<16x128xf32>
    %cst_12 = arith.constant 0.707106769 : f32
    %20 = vector.broadcast %cst_12 : f32 to vector<16x128xf32>
    %21 = arith.mulf %17, %20 : vector<16x128xf32>
    %22 = math.erf %21 : vector<16x128xf32>
    %cst_13 = arith.constant 1.000000e+00 : f32
    %23 = vector.broadcast %cst_13 : f32 to vector<16x128xf32>
    %24 = arith.addf %23, %22 : vector<16x128xf32>
    %25 = arith.mulf %19, %24 : vector<16x128xf32>
    %26 = arith.mulf %15, %25 : vector<16x128xf32>
    %c0_14 = arith.constant 0 : index
    %c0_15 = arith.constant 0 : index
    %27 = vector.load %arg5[%c0_14, %c0_15] : memref<128x64xf32, #tpu.memory_space<vmem>>, vector<128x64xf32>
    %cst_16 = arith.constant dense<0.000000e+00> : vector<16x64xf32>
    %28 = tpu.matmul %26, %27, %cst_16 {dimension_numbers = #tpu.dot_dimension_numbers<[1], [0], [0], [1], [0, 0, 1, 1], [], []>} : vector<16x128xf32>, vector<128x64xf32>, vector<16x64xf32> -> vector<16x64xf32>
    %29 = arith.addf %28, %0 : vector<16x64xf32>
    %c0_17 = arith.constant 0 : index
    %c0_18 = arith.constant 0 : index
    %30 = vector.load %arg6[%c0_17, %c0_18] : memref<16x64xf32, #tpu.memory_space<vmem>>, vector<16x64xf32>
    tpu.vector_store %arg6[%c0_17, %c0_18], %29 {strides = array<i32>} : memref<16x64xf32, #tpu.memory_space<vmem>>, vector<16x64xf32>,
    return
  }
  func.func @transform_0(%arg0: i32) -> (i32, i32) {
    %c0_i32 = arith.constant 0 : i32
    %c0_i32_0 = arith.constant 0 : i32
    return %arg0, %c0_i32 : i32, i32
  }
  func.func @transform_1(%arg0: i32) -> (i32, i32) {
    %c0_i32 = arith.constant 0 : i32
    %c0_i32_0 = arith.constant 0 : i32
    %c0_i32_1 = arith.constant 0 : i32
    return %c0_i32, %c0_i32_0 : i32, i32
  }
  func.func @transform_2(%arg0: i32) -> (i32, i32) {
    %c0_i32 = arith.constant 0 : i32
    %c0_i32_0 = arith.constant 0 : i32
    %c0_i32_1 = arith.constant 0 : i32
    return %c0_i32, %c0_i32_0 : i32, i32
  }
  func.func @transform_3(%arg0: i32) -> (i32, i32) {
    %c0_i32 = arith.constant 0 : i32
    %c0_i32_0 = arith.constant 0 : i32
    %c0_i32_1 = arith.constant 0 : i32
    return %c0_i32, %c0_i32_0 : i32, i32
  }
  func.func @transform_4(%arg0: i32) -> (i32, i32) {
    %c0_i32 = arith.constant 0 : i32
    %c0_i32_0 = arith.constant 0 : i32
    %c0_i32_1 = arith.constant 0 : i32
    return %c0_i32, %c0_i32_0 : i32, i32
  }
  func.func @transform_5(%arg0: i32) -> (i32, i32) {
    %c0_i32 = arith.constant 0 : i32
    %c0_i32_0 = arith.constant 0 : i32
    return %arg0, %c0_i32 : i32, i32
  }
}

</mosaic_0001>

<llo_original>
// kernel: tpu_custom_call.1
$region0: #{tpu_custom_call.1}
  #allocation0 [shape = 'u32[]', space=smem, size = 0x4, offset = 0x4, fixed_abs, tag = 'smem constant byte address 0x4 - core index']
  #allocation1 [shape = 'u32[72,128]{1,0:T(1,128)}', space=vmem, size = 0x9000, scoped, tag = 'internal scratch']
  %s0 = inlined_call_operand.vmem [shape: f32[16,64], index: 0, kind: input, shape index: {}]
  %s1 = inlined_call_operand.vmem [shape: f32[1,64], index: 1, kind: input, shape index: {}]
  %s2 = inlined_call_operand.vmem [shape: f32[64,128], index: 2, kind: input, shape index: {}]
  %s3 = inlined_call_operand.vmem [shape: f32[64,128], index: 3, kind: input, shape index: {}]
  %s4 = inlined_call_operand.vmem [shape: f32[128,64], index: 4, kind: input, shape index: {}]
  %s5 = inlined_call_operand.hbm [shape: f32[16,64], index: 5, kind: output, shape index: {}]
  %s6 = sld [smem:[#allocation0]]
  $region30: #{tpu_custom_call.1} parent=0
    _
  %s8 = ssub.s32 1, %s6
  %s9 = scalar_select 0, %s8, %s6
  $region1: #{tpu_custom_call.1} parent=0
    #allocation2 [shape = 'u8[8192]{0}', space=vmem, size = 0x2000, scoped, tag = 'output window, operand 0, single buffered']
    #allocation3 [shape = 's32[1]{0}', space=sflag, size = 0x4, scoped, tag = 'scoped memory for tpu_custom_call.1']
    %10 = vsyncpa [#allocation3], 0
    // Predicated region
    $region2: #{tpu_custom_call.1} parent=1 // pred_check
      _
    $region3: #{tpu_custom_call.1} parent=1 // pred_check_branch
      %12 = sbr.rel (0) target = $region5
    $region4: #{tpu_custom_call.1} parent=1 // pred_region
      _
    $region5: #{tpu_custom_call.1} parent=1 // pred_fallthru
      _
    // Predicated region
    $region6: #{tpu_custom_call.1} parent=1 // pred_check
      _
    $region7: #{tpu_custom_call.1} parent=1 // pred_check_branch
      %14 = sbr.rel (0) target = $region9
    $region8: #{tpu_custom_call.1} parent=1 // pred_region
      _
    $region9: #{tpu_custom_call.1} parent=1 // pred_fallthru
      _
    // Predicated region
    $region10: #{tpu_custom_call.1} parent=1 // pred_check
      _
    $region11: #{tpu_custom_call.1} parent=1 // pred_check_branch
      %16 = sbr.rel (0) target = $region13
    $region12: #{tpu_custom_call.1} parent=1 // pred_region
      _
    $region13: #{tpu_custom_call.1} parent=1 // pred_fallthru
      _
    // Predicated region
    $region14: #{tpu_custom_call.1} parent=1 // pred_check
      _
    $region15: #{tpu_custom_call.1} parent=1 // pred_check_branch
      %18 = sbr.rel (0) target = $region17
    $region16: #{tpu_custom_call.1} parent=1 // pred_region
      _
    $region17: #{tpu_custom_call.1} parent=1 // pred_fallthru
      _
    // Predicated region
    $region18: #{tpu_custom_call.1} parent=1 // pred_check
      _
    $region19: #{tpu_custom_call.1} parent=1 // pred_check_branch
      %20 = sbr.rel (0) target = $region21
    $region20: #{tpu_custom_call.1} parent=1 // pred_region
      _
    $region21: #{tpu_custom_call.1} parent=1 // pred_fallthru
      _
    %v21 = vld [vmem:[%s0] sm:$0xff]
    %v22 = vld [vmem:[%s0 + $0x8] sm:$0xff]
    %v23 = vmul.f32 %v21, %v21
    %v24 = vmul.f32 %v22, %v22
    %vm25 = vcmask 523264
    %v26 = vsel %vm25, %v23, 0.0
    %27 = vadd.xlane.f32.xlu0 %v26
    %v28 = vpop.xlane.xlu0 %27
    %v29 = vsel %vm25, %v24, 0.0
    %30 = vadd.xlane.f32.xlu0 %v29
    %v31 = vpop.xlane.xlu0 %30
    %v32 = vrcp.pop 64.0
    %v33 = vmul.f32 64.0, %v32
    %v34 = vsub.f32 1.0, %v33
    %v35 = vmul.f32 %v32, %v34
    %v36 = vadd.f32 %v32, %v35
    %vm37 = vweird.f32 %v32
    %v38 = vsel %vm37, %v32, %v36
    %v39 = vmul.f32 %v28, %v38
    %v40 = vmul.f32 %v31, %v38
    %v41 = vadd.f32 %v39, 1e-06
    %v42 = vadd.f32 %v40, 1e-06
    %v43 = vrsqrt.pop %v41
    %v44 = vmul.f32 %v43, %v41
    %v45 = vmul.f32 %v44, %v43
    %v46 = vmul.f32 0.5, %v45
    %v47 = vsub.f32 1.5, %v46
    %v48 = vmul.f32 %v43, %v47
    %vm49 = vweird.f32 %v41
    %vm50 = vweird.f32 %v43
    %vm51 = vmor %vm49, %vm50
    %v52 = vsel %vm51, %v43, %v48
    %v53 = vrsqrt.pop %v42
    %v54 = vmul.f32 %v53, %v42
    %v55 = vmul.f32 %v54, %v53
    %v56 = vmul.f32 0.5, %v55
    %v57 = vsub.f32 1.5, %v56
    %v58 = vmul.f32 %v53, %v57
    %vm59 = vweird.f32 %v42
    %vm60 = vweird.f32 %v53
    %vm61 = vmor %vm59, %vm60
    %v62 = vsel %vm61, %v53, %v58
    %v63 = vld [vmem:[%s1] sm:$0x1]
    %v65 = vperm.slane %v63, 0
    %v67 = vmul.f32 %v65, %v52
    %v68 = vmul.f32 %v65, %v62
    %v69 = vmul.f32 %v21, %v67
    %v70 = vmul.f32 %v22, %v68
    %v71 = vld [vmem:[%s2] sm:$0xff]
    %v72 = vld [vmem:[%s2 + $0x8] sm:$0xff]
    %v73 = vld [vmem:[%s2 + $0x10] sm:$0xff]
    %v74 = vld [vmem:[%s2 + $0x18] sm:$0xff]
    %v75 = vld [vmem:[%s2 + $0x20] sm:$0xff]
    %v76 = vld [vmem:[%s2 + $0x28] sm:$0xff]
    %v77 = vld [vmem:[%s2 + $0x30] sm:$0xff]
    %v78 = vld [vmem:[%s2 + $0x38] sm:$0xff]
    %v80 = vsel %vm25, %v69, 0
    %v83 = vsel %vm25, %v70, 0
    %85 = vmatpush.msra.mxu0 0.0
    %86 = vmatpush.msra.mxu0 0.0
    %87 = vmatpush.msra.mxu0 0.0
    %88 = vmatpush.msra.mxu0 0.0
    %89 = vmatpush.msra.mxu0 0.0
    %90 = vmatpush.msra.mxu0 0.0
    %91 = vmatpush.msra.mxu0 0.0
    %92 = vmatpush.msra.mxu0 0.0
    %93 = vmatpush.msra.mxu0 %v78
    %94 = vmatpush.msra.mxu0 %v77
    %95 = vmatpush.msra.mxu0 %v76
    %96 = vmatpush.msra.mxu0 %v75
    %97 = vmatpush.msra.mxu0 %v74
    %98 = vmatpush.msra.mxu0 %v73
    %99 = vmatpush.msra.mxu0 %v72
    %100 = vmatpush.msra.mxu0 %v71
    %101 = vmatmul.f32.gmra.mxu0 %v80
    %v102 = vpop.f32.mrf.mxu0
    %v103 = vadd.f32 0.0, %v102
    %104 = vmatmul.f32.gmra.mxu0 %v83
    %v105 = vpop.f32.mrf.mxu0
    %v106 = vadd.f32 0.0, %v105
    %107 = vdwg.mxu0
    %v108 = vld [vmem:[%s3] sm:$0xff]
    %v109 = vld [vmem:[%s3 + $0x8] sm:$0xff]
    %v110 = vld [vmem:[%s3 + $0x10] sm:$0xff]
    %v111 = vld [vmem:[%s3 + $0x18] sm:$0xff]
    %v112 = vld [vmem:[%s3 + $0x20] sm:$0xff]
    %v113 = vld [vmem:[%s3 + $0x28] sm:$0xff]
    %v114 = vld [vmem:[%s3 + $0x30] sm:$0xff]
    %v115 = vld [vmem:[%s3 + $0x38] sm:$0xff]
    %116 = vmatpush.msra.mxu0 0.0
    %117 = vmatpush.msra.mxu0 0.0
    %118 = vmatpush.msra.mxu0 0.0
    %119 = vmatpush.msra.mxu0 0.0
    %120 = vmatpush.msra.mxu0 0.0
    %121 = vmatpush.msra.mxu0 0.0
    %122 = vmatpush.msra.mxu0 0.0
    %123 = vmatpush.msra.mxu0 0.0
    %124 = vmatpush.msra.mxu0 %v115
    %125 = vmatpush.msra.mxu0 %v114
    %126 = vmatpush.msra.mxu0 %v113
    %127 = vmatpush.msra.mxu0 %v112
    %128 = vmatpush.msra.mxu0 %v111
    %129 = vmatpush.msra.mxu0 %v110
    %130 = vmatpush.msra.mxu0 %v109
    %131 = vmatpush.msra.mxu0 %v108
    %132 = vmatmul.f32.gmra.mxu0 %v80
    %v133 = vpop.f32.mrf.mxu0
    %v134 = vadd.f32 0.0, %v133
    %135 = vmatmul.f32.gmra.mxu0 %v83
    %v136 = vpop.f32.mrf.mxu0
    %v137 = vadd.f32 0.0, %v136
    %138 = vdwg.mxu0
    %v139 = vmul.f32 %v134, 0.5
    %v140 = vmul.f32 %v137, 0.5
    %v141 = vmul.f32 %v134, 0.70710677
    %v142 = vmul.f32 %v137, 0.70710677
    %v143 = vmul.f32 %v141, %v141
    %v144 = vmin.f32 16.0, %v143
    %v145 = vmul.f32 %v144, 2.1237322e-06
    %v146 = vadd.f32 %v145, 0.00028619796
    %v147 = vmul.f32 %v144, %v146
    %v148 = vadd.f32 %v147, 0.0036580483
    %v149 = vmul.f32 %v144, %v148
    %v150 = vadd.f32 %v149, 0.05243302
    %v151 = vmul.f32 %v144, %v150
    %v152 = vadd.f32 %v151, 0.18741608
    %v153 = vmul.f32 %v144, %v152
    %v154 = vadd.f32 %v153, 1.1283791
    %v155 = vmul.f32 %v141, %v154
    %v156 = vmul.f32 %v144, 3.8918573e-05
    %v157 = vadd.f32 %v156, 0.001143296
    %v158 = vmul.f32 %v144, %v157
    %v159 = vadd.f32 %v158, 0.014752088
    %v160 = vmul.f32 %v144, %v159
    %v161 = vadd.f32 %v160, 0.112945676
    %v162 = vmul.f32 %v144, %v161
    %v163 = vadd.f32 %v162, 0.4994258
    %v164 = vmul.f32 %v144, %v163
    %v165 = vadd.f32 %v164, 1.0
    %v166 = vrcp.pop %v165
    %v167 = vmul.f32 %v165, %v166
    %v168 = vsub.f32 1.0, %v167
    %v169 = vmul.f32 %v166, %v168
    %v170 = vadd.f32 %v166, %v169
    %vm171 = vweird.f32 %v165
    %vm172 = vweird.f32 %v166
    %vm173 = vmor %vm171, %vm172
    %v174 = vsel %vm173, %v166, %v170
    %v175 = vand.u32 2147483647, %v165
    %vm176 = vcmp.eq.f32.partialorder %v175, 8.507059e+37
    %v177 = vand.u32 %v165, 2147483648
    %v178 = vor.u32 1.1754944e-38, %v177
    %v179 = vsel %vm176, %v178, %v174
    %v180 = vmul.f32 %v155, %v179
    %v181 = vmin.f32 %v180, 1.0
    %v182 = vmax.f32 %v181, -1.0
    %v183 = vmul.f32 %v142, %v142
    %v184 = vmin.f32 16.0, %v183
    %v185 = vmul.f32 %v184, 2.1237322e-06
    %v186 = vadd.f32 %v185, 0.00028619796
    %v187 = vmul.f32 %v184, %v186
    %v188 = vadd.f32 %v187, 0.0036580483
    %v189 = vmul.f32 %v184, %v188
    %v190 = vadd.f32 %v189, 0.05243302
    %v191 = vmul.f32 %v184, %v190
    %v192 = vadd.f32 %v191, 0.18741608
    %v193 = vmul.f32 %v184, %v192
    %v194 = vadd.f32 %v193, 1.1283791
    %v195 = vmul.f32 %v142, %v194
    %v196 = vmul.f32 %v184, 3.8918573e-05
    %v197 = vadd.f32 %v196, 0.001143296
    %v198 = vmul.f32 %v184, %v197
    %v199 = vadd.f32 %v198, 0.014752088
    %v200 = vmul.f32 %v184, %v199
    %v201 = vadd.f32 %v200, 0.112945676
    %v202 = vmul.f32 %v184, %v201
    %v203 = vadd.f32 %v202, 0.4994258
    %v204 = vmul.f32 %v184, %v203
    %v205 = vadd.f32 %v204, 1.0
    %v206 = vrcp.pop %v205
    %v207 = vmul.f32 %v205, %v206
    %v208 = vsub.f32 1.0, %v207
    %v209 = vmul.f32 %v206, %v208
    %v210 = vadd.f32 %v206, %v209
    %vm211 = vweird.f32 %v205
    %vm212 = vweird.f32 %v206
    %vm213 = vmor %vm211, %vm212
    %v214 = vsel %vm213, %v206, %v210
    %v215 = vand.u32 2147483647, %v205
    %vm216 = vcmp.eq.f32.partialorder %v215, 8.507059e+37
    %v217 = vand.u32 %v205, 2147483648
    %v218 = vor.u32 1.1754944e-38, %v217
    %v219 = vsel %vm216, %v218, %v214
    %v220 = vmul.f32 %v195, %v219
    %v221 = vmin.f32 %v220, 1.0
    %v222 = vmax.f32 %v221, -1.0
    %v223 = vadd.f32 %v182, 1.0
    %v224 = vadd.f32 %v222, 1.0
    %v225 = vmul.f32 %v139, %v223
    %v226 = vmul.f32 %v140, %v224
    %v227 = vmul.f32 %v103, %v225
    %v228 = vmul.f32 %v106, %v226
    %v229 = vld [vmem:[%s4] sm:$0xff]
    %v230 = vld [vmem:[%s4 + $0x8] sm:$0xff]
    %v231 = vld [vmem:[%s4 + $0x10] sm:$0xff]
    %v232 = vld [vmem:[%s4 + $0x18] sm:$0xff]
    %v233 = vld [vmem:[%s4 + $0x20] sm:$0xff]
    %v234 = vld [vmem:[%s4 + $0x28] sm:$0xff]
    %v235 = vld [vmem:[%s4 + $0x30] sm:$0xff]
    %v236 = vld [vmem:[%s4 + $0x38] sm:$0xff]
    %v237 = vld [vmem:[%s4 + $0x40] sm:$0xff]
    %v238 = vld [vmem:[%s4 + $0x48] sm:$0xff]
    %v239 = vld [vmem:[%s4 + $0x50] sm:$0xff]
    %v240 = vld [vmem:[%s4 + $0x58] sm:$0xff]
    %v241 = vld [vmem:[%s4 + $0x60] sm:$0xff]
    %v242 = vld [vmem:[%s4 + $0x68] sm:$0xff]
    %v243 = vld [vmem:[%s4 + $0x70] sm:$0xff]
    %v244 = vld [vmem:[%s4 + $0x78] sm:$0xff]
    %245 = vmatpush.msra.mxu0 %v244
    %246 = vmatpush.msra.mxu0 %v243
    %247 = vmatpush.msra.mxu0 %v242
    %248 = vmatpush.msra.mxu0 %v241
    %249 = vmatpush.msra.mxu0 %v240
    %250 = vmatpush.msra.mxu0 %v239
    %251 = vmatpush.msra.mxu0 %v238
    %252 = vmatpush.msra.mxu0 %v237
    %253 = vmatpush.msra.mxu0 %v236
    %254 = vmatpush.msra.mxu0 %v235
    %255 = vmatpush.msra.mxu0 %v234
    %256 = vmatpush.msra.mxu0 %v233
    %257 = vmatpush.msra.mxu0 %v232
    %258 = vmatpush.msra.mxu0 %v231
    %259 = vmatpush.msra.mxu0 %v230
    %260 = vmatpush.msra.mxu0 %v229
    %261 = vmatmul.f32.gmra.mxu0 %v227
    %v262 = vpop.f32.mrf.mxu0
    %v263 = vadd.f32 %v21, %v262
    %264 = vmatmul.f32.gmra.mxu0 %v228
    %v265 = vpop.f32.mrf.mxu0
    %v266 = vadd.f32 %v22, %v265
    %267 = vdwg.mxu0
    %268 = vst.msk [vmem:[#allocation2] sm:$0xff] %vm25, %v263
    %269 = vst.msk [vmem:[#allocation2 + $0x8] sm:$0xff] %vm25, %v266
    // Predicated region
    $region22: #{tpu_custom_call.1} parent=1 // pred_check
      _
    $region23: #{tpu_custom_call.1} parent=1 // pred_check_branch
      %271 = sbr.rel (0) target = $region25
    $region24: #{tpu_custom_call.1} parent=1 // pred_region
      %273 = vsyncadd [#allocation3], 0
      %s274 = sshll.u32 [#allocation2], 4
      %s275 = int_to_ptr.vmem [resolvable:$true] %s274
      %s276 = sshll.u32 %s5, 4
      %s277 = int_to_ptr.hbm [resolvable:$true] %s276
      %282 = dma.vmem_to_hbm [thread:$0]  %s275, 256, %s277, [#allocation3], 128, 128, 8
    $region25: #{tpu_custom_call.1} parent=1 // pred_fallthru
      _
    // Predicated region
    $region26: #{tpu_custom_call.1} parent=1 // pred_check
      _
    $region27: #{tpu_custom_call.1} parent=1 // pred_check_branch
      %284 = sbr.rel (0) target = $region29
    $region28: #{tpu_custom_call.1} parent=1 // pred_region
      %286 = dma.done [#allocation3], 256
    $region29: #{tpu_custom_call.1} parent=1 // pred_fallthru
      _
    %287 = vsyncpa [#allocation3], 1

</llo_original>
